<compile_context>
chip_gen: v7x
topology: tpu7x:2x2x1
jax: 0.10.0
libtpu: 0.0.40
codegen_flags: <defaults>
</compile_context>

<pallas_src>
import math

import jax
import jax.numpy as jnp
from jax.experimental import pallas as pl
from jax.experimental.pallas import tpu as pltpu

LANE = 128          # lane width (minor dim)
SUBLANE_BF16 = 16   # bf16 sublane packing: (16, 128) sub-tiles


def _round_up(x, m):
    return (x + m - 1) // m * m


def _pad2d(x, rows, cols):
    r, c = x.shape
    return jnp.pad(x, ((0, rows - r), (0, cols - c)))


# ----------------------------- Pallas kernel -------------------------------

def _qfunction_kernel(x_ref, w1_ref, b1_ref, w2_ref, b2_ref, w3_ref, b3_ref,
                      out_ref):
    # Layer 1: single MXU pass over the pre-concatenated [obs | action] block.
    h = jnp.dot(x_ref[...], w1_ref[...], preferred_element_type=jnp.float32)
    h = jnp.maximum(h + b1_ref[...], 0.0)                        # f32 VPU

    # Layer 2: cast to bf16 only at the MXU boundary; accumulate in f32.
    h = jnp.dot(h.astype(w2_ref.dtype), w2_ref[...],
                preferred_element_type=jnp.float32)
    h = jnp.maximum(h + b2_ref[...], 0.0)                        # f32 VPU

    # Layer 3 (logical N=1): VPU multiply + XLU lane reduce instead of a 1-column
    # MXU dot. Stored as a narrow (tm, 1) column -> tm*4 B HBM writeback per tile
    # (previously tm*128*4 B broadcast).
    q = jnp.sum(h * w3_ref[...], axis=-1, keepdims=True) + b3_ref[...]
    out_ref[...] = q.astype(out_ref.dtype)


def _make_call(tm, b_pad, in_pad, kparams, single_buffer_weights):
    row_map = lambda i: (i, 0)       # batch-tiled operands
    const_map = lambda i: (0, 0)     # weights: same block every step -> resident

    if single_buffer_weights:
        def wspec(shape):
            return pl.BlockSpec(shape, const_map, pipeline_mode=pl.Buffered(1))
    else:
        def wspec(shape):
            return pl.BlockSpec(shape, const_map)

    return pl.pallas_call(
        _qfunction_kernel,
        out_shape=jax.ShapeDtypeStruct((b_pad, 1), jnp.float32),
        grid=(b_pad // tm,),
        in_specs=[
            pl.BlockSpec((tm, in_pad), row_map),
            wspec(kparams["w1"].shape),
            wspec(kparams["b1"].shape),
            wspec(kparams["w2"].shape),
            wspec(kparams["b2"].shape),
            wspec(kparams["w3"].shape),
            wspec(kparams["b3"].shape),
        ],
        out_specs=pl.BlockSpec((tm, 1), row_map),
        compiler_params=pltpu.CompilerParams(
            dimension_semantics=("parallel",),       # megacore sharding on v7x
            vmem_limit_bytes=32 * 1024 * 1024,       # safe on v5e/v6e/v7x
        ),
    )


def qfunction_forward(obs, action, kparams, *, block_rows=512):
    """q = trunk(cat([obs, action], 1)); returns (B, 1) float32."""
    B = obs.shape[0]
    assert action.shape[0] == B
    in_pad, _ = kparams["w1"].shape

    # Batch-row tile: multiple of 16 (bf16 sublane packing), large enough to
    # amortize the ~0.35 us per-grid-step overhead, small at toy sizes.
    b16 = _round_up(B, SUBLANE_BF16)
    tm = min(_round_up(block_rows, SUBLANE_BF16), b16)
    # v7x megacore: if a large batch would fit in a single tile, split so the
    # grid keeps >= 2 steps to shard across the 2 TensorCores.
    if tm == b16 and b16 >= 2 * LANE:
        tm = _round_up(b16 // 2, SUBLANE_BF16)
    b_pad = _round_up(B, tm)

    # Fold the concat into a single lane-padded bf16 input stream (zero padding
    # is exact: padded columns hit zero W1 rows).
    x = jnp.concatenate([obs, action], axis=1).astype(jnp.bfloat16)
    x = _pad2d(x, b_pad, in_pad)

    args = (x, kparams["w1"], kparams["b1"], kparams["w2"], kparams["b2"],
            kparams["w3"], kparams["b3"])
    try:
        out = _make_call(tm, b_pad, in_pad, kparams, True)(*args)
    except Exception:
        # Fallback: default (double-buffered) resident weights. Identical math;
        # only costs a little extra VMEM headroom.
        out = _make_call(tm, b_pad, in_pad, kparams, False)(*args)

    return out[:B]


# ----------------------------- parameters ----------------------------------

def make_qfunction_params(key, obs_dim, action_dim, hidden_dim):
    """Logical (unpadded, f32) params; PyTorch nn.Linear default init."""
    def linear(k, fan_in, fan_out):
        kw, kb = jax.random.split(k)
        bound = 1.0 / math.sqrt(fan_in)
        w = jax.random.uniform(kw, (fan_in, fan_out), jnp.float32, -bound, bound)
        b = jax.random.uniform(kb, (fan_out,), jnp.float32, -bound, bound)
        return w, b

    k1, k2, k3 = jax.random.split(key, 3)
    w1, b1 = linear(k1, obs_dim + action_dim, hidden_dim)
    w2, b2 = linear(k2, hidden_dim, hidden_dim)
    w3, b3 = linear(k3, hidden_dim, 1)
    return {"w1": w1, "b1": b1, "w2": w2, "b2": b2, "w3": w3, "b3": b3,
            "obs_dim": obs_dim, "action_dim": action_dim, "hidden_dim": hidden_dim}


def prepare_kernel_params(p):
    """One-time padding (lane dims -> multiples of 128) + bf16 cast of MXU weights.

    Zero padding is exact: padded input cols hit zero W1 rows, padded hidden cols
    get bias 0 -> relu(0)=0 -> zero W2 rows / zero W3 entries, so q is unchanged.
    """
    od, ad, hd = p["obs_dim"], p["action_dim"], p["hidden_dim"]
    in_pad = _round_up(od + ad, LANE)
    h_pad = _round_up(hd, LANE)

    return {
        # Single W1 for the pre-concatenated [obs | action] input stream.
        "w1": _pad2d(p["w1"], in_pad, h_pad).astype(jnp.bfloat16),
        "b1": _pad2d(p["b1"][None, :], 1, h_pad),                  # f32
        "w2": _pad2d(p["w2"], h_pad, h_pad).astype(jnp.bfloat16),
        "b2": _pad2d(p["b2"][None, :], 1, h_pad),                  # f32
        # Final (N=1) layer stays f32: it runs on the VPU (multiply + lane reduce).
        "w3": _pad2d(p["w3"].T, 1, h_pad),                         # [1, h_pad] f32
        "b3": p["b3"].reshape(1, 1).astype(jnp.float32),
    }


# ----------------------------- reference -----------------------------------

def qfunction_reference(obs, action, p):
    x = jnp.concatenate([obs, action], axis=1)
    h = jax.nn.relu(x @ p["w1"] + p["b1"])
    h = jax.nn.relu(h @ p["w2"] + p["b2"])
    return h @ p["w3"] + p["b3"]


# ------------------------------- main ---------------------------------------

if __name__ == "__main__":
    B = 2
    obs_dim = 32
    action_dim = 4
    hidden_dim = 32

    key = jax.random.PRNGKey(0)
    k_obs, k_act, k_par = jax.random.split(key, 3)
    obs = jax.random.normal(k_obs, (B, obs_dim), dtype=jnp.float32)
    action = jax.random.normal(k_act, (B, action_dim), dtype=jnp.float32)

    params = make_qfunction_params(k_par, obs_dim, action_dim, hidden_dim)
    kparams = prepare_kernel_params(params)

    q = qfunction_forward(obs, action, kparams)
    jax.block_until_ready(q)

    assert q.shape == (B, 1)
    assert bool(jnp.all(jnp.isfinite(q)))

    # Correctness vs. full-f32 reference (loose tolerance for bf16 matmuls).
    q_ref = qfunction_reference(obs, action, params)
    assert bool(jnp.allclose(q, q_ref, atol=5e-2, rtol=5e-2)), (q, q_ref)

    print("KERNEL_OK")
</pallas_src>

<mosaic_0001>
module attributes {stable_mosaic.version = 11 : i64} {
  func.func @_qfunction_kernel(%arg0: i32, %arg1: memref<16x128xbf16, #tpu.memory_space<vmem>>, %arg2: memref<128x128xbf16, #tpu.memory_space<vmem>>, %arg3: memref<1x128xf32, #tpu.memory_space<vmem>>, %arg4: memref<128x128xbf16, #tpu.memory_space<vmem>>, %arg5: memref<1x128xf32, #tpu.memory_space<vmem>>, %arg6: memref<1x128xf32, #tpu.memory_space<vmem>>, %arg7: memref<1x1xf32, #tpu.memory_space<vmem>>, %arg8: memref<16x1xf32, #tpu.memory_space<vmem>>) attributes {dimension_semantics = [#tpu.dimension_semantics<parallel>], iteration_bounds = array<i64: 1>, scalar_prefetch = 0 : i64, scratch_operands = 0 : i64, tpu.core_type = #tpu.core_type<tc>, window_params = [{transform_indices = @transform_0, window_bounds = array<i64: 16, 128>}, {pipeline_mode = #tpu.pipeline_mode<synchronous>, transform_indices = @transform_1, window_bounds = array<i64: 128, 128>}, {pipeline_mode = #tpu.pipeline_mode<synchronous>, transform_indices = @transform_2, window_bounds = array<i64: 1, 128>}, {pipeline_mode = #tpu.pipeline_mode<synchronous>, transform_indices = @transform_3, window_bounds = array<i64: 128, 128>}, {pipeline_mode = #tpu.pipeline_mode<synchronous>, transform_indices = @transform_4, window_bounds = array<i64: 1, 128>}, {pipeline_mode = #tpu.pipeline_mode<synchronous>, transform_indices = @transform_5, window_bounds = array<i64: 1, 128>}, {pipeline_mode = #tpu.pipeline_mode<synchronous>, transform_indices = @transform_6, window_bounds = array<i64: 1, 1>}, {transform_indices = @transform_7, window_bounds = array<i64: 16, 1>}]} {
    %c0 = arith.constant 0 : index
    %c0_0 = arith.constant 0 : index
    %0 = vector.load %arg1[%c0, %c0_0] : memref<16x128xbf16, #tpu.memory_space<vmem>>, vector<16x128xbf16>
    %c0_1 = arith.constant 0 : index
    %c0_2 = arith.constant 0 : index
    %1 = vector.load %arg2[%c0_1, %c0_2] : memref<128x128xbf16, #tpu.memory_space<vmem>>, vector<128x128xbf16>
    %cst = arith.constant dense<0.000000e+00> : vector<16x128xf32>
    %2 = tpu.matmul %0, %1, %cst {dimension_numbers = #tpu.dot_dimension_numbers<[1], [0], [0], [1], [0, 0, 1, 1], [], []>} : vector<16x128xbf16>, vector<128x128xbf16>, vector<16x128xf32> -> vector<16x128xf32>
    %c0_3 = arith.constant 0 : index
    %c0_4 = arith.constant 0 : index
    %3 = vector.load %arg3[%c0_3, %c0_4] : memref<1x128xf32, #tpu.memory_space<vmem>>, vector<1x128xf32>
    %4 = vector.broadcast %3 : vector<1x128xf32> to vector<16x128xf32>
    %5 = arith.addf %2, %4 : vector<16x128xf32>
    %cst_5 = arith.constant 0.000000e+00 : f32
    %6 = vector.broadcast %cst_5 : f32 to vector<16x128xf32>
    %7 = arith.maximumf %5, %6 : vector<16x128xf32>
    %8 = arith.truncf %7 : vector<16x128xf32> to vector<16x128xbf16>
    %c0_6 = arith.constant 0 : index
    %c0_7 = arith.constant 0 : index
    %9 = vector.load %arg4[%c0_6, %c0_7] : memref<128x128xbf16, #tpu.memory_space<vmem>>, vector<128x128xbf16>
    %cst_8 = arith.constant dense<0.000000e+00> : vector<16x128xf32>
    %10 = tpu.matmul %8, %9, %cst_8 {dimension_numbers = #tpu.dot_dimension_numbers<[1], [0], [0], [1], [0, 0, 1, 1], [], []>} : vector<16x128xbf16>, vector<128x128xbf16>, vector<16x128xf32> -> vector<16x128xf32>
    %c0_9 = arith.constant 0 : index
    %c0_10 = arith.constant 0 : index
    %11 = vector.load %arg5[%c0_9, %c0_10] : memref<1x128xf32, #tpu.memory_space<vmem>>, vector<1x128xf32>
    %12 = vector.broadcast %11 : vector<1x128xf32> to vector<16x128xf32>
    %13 = arith.addf %10, %12 : vector<16x128xf32>
    %cst_11 = arith.constant 0.000000e+00 : f32
    %14 = vector.broadcast %cst_11 : f32 to vector<16x128xf32>
    %15 = arith.maximumf %13, %14 : vector<16x128xf32>
    %c0_12 = arith.constant 0 : index
    %c0_13 = arith.constant 0 : index
    %16 = vector.load %arg6[%c0_12, %c0_13] : memref<1x128xf32, #tpu.memory_space<vmem>>, vector<1x128xf32>
    %17 = vector.broadcast %16 : vector<1x128xf32> to vector<16x128xf32>
    %18 = arith.mulf %15, %17 : vector<16x128xf32>
    %cst_14 = arith.constant dense<0.000000e+00> : vector<16xf32>
    %19 = vector.multi_reduction <add>, %18, %cst_14 [1] : vector<16x128xf32> to vector<16xf32>
    %20 = vector.shape_cast %19 : vector<16xf32> to vector<16x1xf32>
    %c0_15 = arith.constant 0 : index
    %c0_16 = arith.constant 0 : index
    %21 = vector.load %arg7[%c0_15, %c0_16] : memref<1x1xf32, #tpu.memory_space<vmem>>, vector<1x1xf32>
    %22 = vector.broadcast %21 : vector<1x1xf32> to vector<16x1xf32>
    %23 = arith.addf %20, %22 : vector<16x1xf32>
    %c0_17 = arith.constant 0 : index
    %c0_18 = arith.constant 0 : index
    %24 = vector.load %arg8[%c0_17, %c0_18] : memref<16x1xf32, #tpu.memory_space<vmem>>, vector<16x1xf32>
    tpu.vector_store %arg8[%c0_17, %c0_18], %23 {strides = array<i32>} : memref<16x1xf32, #tpu.memory_space<vmem>>, vector<16x1xf32>,
    return
  }
  func.func @transform_0(%arg0: i32) -> (i32, i32) {
    %c0_i32 = arith.constant 0 : i32
    %c0_i32_0 = arith.constant 0 : i32
    return %arg0, %c0_i32 : i32, i32
  }
  func.func @transform_1(%arg0: i32) -> (i32, i32) {
    %c0_i32 = arith.constant 0 : i32
    %c0_i32_0 = arith.constant 0 : i32
    %c0_i32_1 = arith.constant 0 : i32
    return %c0_i32, %c0_i32_0 : i32, i32
  }
  func.func @transform_2(%arg0: i32) -> (i32, i32) {
    %c0_i32 = arith.constant 0 : i32
    %c0_i32_0 = arith.constant 0 : i32
    %c0_i32_1 = arith.constant 0 : i32
    return %c0_i32, %c0_i32_0 : i32, i32
  }
  func.func @transform_3(%arg0: i32) -> (i32, i32) {
    %c0_i32 = arith.constant 0 : i32
    %c0_i32_0 = arith.constant 0 : i32
    %c0_i32_1 = arith.constant 0 : i32
    return %c0_i32, %c0_i32_0 : i32, i32
  }
  func.func @transform_4(%arg0: i32) -> (i32, i32) {
    %c0_i32 = arith.constant 0 : i32
    %c0_i32_0 = arith.constant 0 : i32
    %c0_i32_1 = arith.constant 0 : i32
    return %c0_i32, %c0_i32_0 : i32, i32
  }
  func.func @transform_5(%arg0: i32) -> (i32, i32) {
    %c0_i32 = arith.constant 0 : i32
    %c0_i32_0 = arith.constant 0 : i32
    %c0_i32_1 = arith.constant 0 : i32
    return %c0_i32, %c0_i32_0 : i32, i32
  }
  func.func @transform_6(%arg0: i32) -> (i32, i32) {
    %c0_i32 = arith.constant 0 : i32
    %c0_i32_0 = arith.constant 0 : i32
    %c0_i32_1 = arith.constant 0 : i32
    return %c0_i32, %c0_i32_0 : i32, i32
  }
  func.func @transform_7(%arg0: i32) -> (i32, i32) {
    %c0_i32 = arith.constant 0 : i32
    %c0_i32_0 = arith.constant 0 : i32
    return %arg0, %c0_i32 : i32, i32
  }
}

module attributes {stable_mosaic.version = 11 : i64} {
  func.func @_qfunction_kernel(%arg0: i32, %arg1: memref<16x128xbf16, #tpu.memory_space<vmem>>, %arg2: memref<128x128xbf16, #tpu.memory_space<vmem>>, %arg3: memref<1x128xf32, #tpu.memory_space<vmem>>, %arg4: memref<128x128xbf16, #tpu.memory_space<vmem>>, %arg5: memref<1x128xf32, #tpu.memory_space<vmem>>, %arg6: memref<1x128xf32, #tpu.memory_space<vmem>>, %arg7: memref<1x1xf32, #tpu.memory_space<vmem>>, %arg8: memref<16x1xf32, #tpu.memory_space<vmem>>) attributes {dimension_semantics = [#tpu.dimension_semantics<parallel>], iteration_bounds = array<i64: 1>, scalar_prefetch = 0 : i64, scratch_operands = 0 : i64, tpu.core_type = #tpu.core_type<tc>, window_params = [{transform_indices = @transform_0, window_bounds = array<i64: 16, 128>}, {pipeline_mode = #tpu.pipeline_mode<synchronous>, transform_indices = @transform_1, window_bounds = array<i64: 128, 128>}, {pipeline_mode = #tpu.pipeline_mode<synchronous>, transform_indices = @transform_2, window_bounds = array<i64: 1, 128>}, {pipeline_mode = #tpu.pipeline_mode<synchronous>, transform_indices = @transform_3, window_bounds = array<i64: 128, 128>}, {pipeline_mode = #tpu.pipeline_mode<synchronous>, transform_indices = @transform_4, window_bounds = array<i64: 1, 128>}, {pipeline_mode = #tpu.pipeline_mode<synchronous>, transform_indices = @transform_5, window_bounds = array<i64: 1, 128>}, {pipeline_mode = #tpu.pipeline_mode<synchronous>, transform_indices = @transform_6, window_bounds = array<i64: 1, 1>}, {transform_indices = @transform_7, window_bounds = array<i64: 16, 1>}]} {
    %c0 = arith.constant 0 : index
    %c0_0 = arith.constant 0 : index
    %0 = vector.load %arg1[%c0, %c0_0] : memref<16x128xbf16, #tpu.memory_space<vmem>>, vector<16x128xbf16>
    %c0_1 = arith.constant 0 : index
    %c0_2 = arith.constant 0 : index
    %1 = vector.load %arg2[%c0_1, %c0_2] : memref<128x128xbf16, #tpu.memory_space<vmem>>, vector<128x128xbf16>
    %cst = arith.constant dense<0.000000e+00> : vector<16x128xf32>
    %2 = tpu.matmul %0, %1, %cst {dimension_numbers = #tpu.dot_dimension_numbers<[1], [0], [0], [1], [0, 0, 1, 1], [], []>} : vector<16x128xbf16>, vector<128x128xbf16>, vector<16x128xf32> -> vector<16x128xf32>
    %c0_3 = arith.constant 0 : index
    %c0_4 = arith.constant 0 : index
    %3 = vector.load %arg3[%c0_3, %c0_4] : memref<1x128xf32, #tpu.memory_space<vmem>>, vector<1x128xf32>
    %4 = vector.broadcast %3 : vector<1x128xf32> to vector<16x128xf32>
    %5 = arith.addf %2, %4 : vector<16x128xf32>
    %cst_5 = arith.constant 0.000000e+00 : f32
    %6 = vector.broadcast %cst_5 : f32 to vector<16x128xf32>
    %7 = arith.maximumf %5, %6 : vector<16x128xf32>
    %8 = arith.truncf %7 : vector<16x128xf32> to vector<16x128xbf16>
    %c0_6 = arith.constant 0 : index
    %c0_7 = arith.constant 0 : index
    %9 = vector.load %arg4[%c0_6, %c0_7] : memref<128x128xbf16, #tpu.memory_space<vmem>>, vector<128x128xbf16>
    %cst_8 = arith.constant dense<0.000000e+00> : vector<16x128xf32>
    %10 = tpu.matmul %8, %9, %cst_8 {dimension_numbers = #tpu.dot_dimension_numbers<[1], [0], [0], [1], [0, 0, 1, 1], [], []>} : vector<16x128xbf16>, vector<128x128xbf16>, vector<16x128xf32> -> vector<16x128xf32>
    %c0_9 = arith.constant 0 : index
    %c0_10 = arith.constant 0 : index
    %11 = vector.load %arg5[%c0_9, %c0_10] : memref<1x128xf32, #tpu.memory_space<vmem>>, vector<1x128xf32>
    %12 = vector.broadcast %11 : vector<1x128xf32> to vector<16x128xf32>
    %13 = arith.addf %10, %12 : vector<16x128xf32>
    %cst_11 = arith.constant 0.000000e+00 : f32
    %14 = vector.broadcast %cst_11 : f32 to vector<16x128xf32>
    %15 = arith.maximumf %13, %14 : vector<16x128xf32>
    %c0_12 = arith.constant 0 : index
    %c0_13 = arith.constant 0 : index
    %16 = vector.load %arg6[%c0_12, %c0_13] : memref<1x128xf32, #tpu.memory_space<vmem>>, vector<1x128xf32>
    %17 = vector.broadcast %16 : vector<1x128xf32> to vector<16x128xf32>
    %18 = arith.mulf %15, %17 : vector<16x128xf32>
    %cst_14 = arith.constant dense<0.000000e+00> : vector<16xf32>
    %19 = vector.multi_reduction <add>, %18, %cst_14 [1] : vector<16x128xf32> to vector<16xf32>
    %20 = vector.shape_cast %19 : vector<16xf32> to vector<16x1xf32>
    %c0_15 = arith.constant 0 : index
    %c0_16 = arith.constant 0 : index
    %21 = vector.load %arg7[%c0_15, %c0_16] : memref<1x1xf32, #tpu.memory_space<vmem>>, vector<1x1xf32>
    %22 = vector.broadcast %21 : vector<1x1xf32> to vector<16x1xf32>
    %23 = arith.addf %20, %22 : vector<16x1xf32>
    %c0_17 = arith.constant 0 : index
    %c0_18 = arith.constant 0 : index
    %24 = vector.load %arg8[%c0_17, %c0_18] : memref<16x1xf32, #tpu.memory_space<vmem>>, vector<16x1xf32>
    tpu.vector_store %arg8[%c0_17, %c0_18], %23 {strides = array<i32>} : memref<16x1xf32, #tpu.memory_space<vmem>>, vector<16x1xf32>,
    return
  }
  func.func @transform_0(%arg0: i32) -> (i32, i32) {
    %c0_i32 = arith.constant 0 : i32
    %c0_i32_0 = arith.constant 0 : i32
    return %arg0, %c0_i32 : i32, i32
  }
  func.func @transform_1(%arg0: i32) -> (i32, i32) {
    %c0_i32 = arith.constant 0 : i32
    %c0_i32_0 = arith.constant 0 : i32
    %c0_i32_1 = arith.constant 0 : i32
    return %c0_i32, %c0_i32_0 : i32, i32
  }
  func.func @transform_2(%arg0: i32) -> (i32, i32) {
    %c0_i32 = arith.constant 0 : i32
    %c0_i32_0 = arith.constant 0 : i32
    %c0_i32_1 = arith.constant 0 : i32
    return %c0_i32, %c0_i32_0 : i32, i32
  }
  func.func @transform_3(%arg0: i32) -> (i32, i32) {
    %c0_i32 = arith.constant 0 : i32
    %c0_i32_0 = arith.constant 0 : i32
    %c0_i32_1 = arith.constant 0 : i32
    return %c0_i32, %c0_i32_0 : i32, i32
  }
  func.func @transform_4(%arg0: i32) -> (i32, i32) {
    %c0_i32 = arith.constant 0 : i32
    %c0_i32_0 = arith.constant 0 : i32
    %c0_i32_1 = arith.constant 0 : i32
    return %c0_i32, %c0_i32_0 : i32, i32
  }
  func.func @transform_5(%arg0: i32) -> (i32, i32) {
    %c0_i32 = arith.constant 0 : i32
    %c0_i32_0 = arith.constant 0 : i32
    %c0_i32_1 = arith.constant 0 : i32
    return %c0_i32, %c0_i32_0 : i32, i32
  }
  func.func @transform_6(%arg0: i32) -> (i32, i32) {
    %c0_i32 = arith.constant 0 : i32
    %c0_i32_0 = arith.constant 0 : i32
    %c0_i32_1 = arith.constant 0 : i32
    return %c0_i32, %c0_i32_0 : i32, i32
  }
  func.func @transform_7(%arg0: i32) -> (i32, i32) {
    %c0_i32 = arith.constant 0 : i32
    %c0_i32_0 = arith.constant 0 : i32
    return %arg0, %c0_i32 : i32, i32
  }
}

</mosaic_0001>

<llo_original>
// kernel: tpu_custom_call.1
$region0: #{tpu_custom_call.1}
  #allocation0 [shape = 'u32[]', space=smem, size = 0x4, offset = 0x4, fixed_abs, tag = 'smem constant byte address 0x4 - core index']
  #allocation1 [shape = 'u32[144,128]{1,0:T(1,128)}', space=vmem, size = 0x12000, scoped, tag = 'internal scratch']
  #allocation2 [shape = 'f32[1,1]{1,0:T(1,128)S(1)}', space=vmem, size = 0x200, scoped, tag = 'scoped memory for tpu_custom_call.1']
  %s0 = inlined_call_operand.hbm [shape: bf16[16,128], index: 0, kind: input, shape index: {}]
  %s1 = inlined_call_operand.hbm [shape: bf16[128,128], index: 1, kind: input, shape index: {}]
  %s2 = inlined_call_operand.vmem [shape: f32[1,128], index: 2, kind: input, shape index: {}]
  %s3 = inlined_call_operand.hbm [shape: bf16[128,128], index: 3, kind: input, shape index: {}]
  %s4 = inlined_call_operand.vmem [shape: f32[1,128], index: 4, kind: input, shape index: {}]
  %s5 = inlined_call_operand.vmem [shape: f32[1,128], index: 5, kind: input, shape index: {}]
  %s6 = inlined_call_operand.<no memory space> [shape: f32[1,1], index: 6, kind: input, shape index: {}]
  %s7 = inlined_call_operand.vmem [shape: f32[16,1], index: 7, kind: output, shape index: {}]
  %s8 = sld [smem:[#allocation0]]
  $region50: #{tpu_custom_call.1} parent=0
    _
  %s10 = ssub.s32 1, %s8
  %s11 = scalar_select 0, %s10, %s8
  %v12 = vstv %s6
  %13 = vst [vmem:[#allocation2] sm:$0x1] %v12
  $region1: #{tpu_custom_call.1} parent=0
    #allocation3 [shape = 'u8[4096]{0}', space=vmem, size = 0x1000, scoped, tag = 'input window, operand 0, single buffered']
    #allocation4 [shape = 's32[1]{0}', space=sflag, size = 0x4, scoped, tag = 'scoped memory for tpu_custom_call.1']
    #allocation5 [shape = 'u8[32768]{0}', space=vmem, size = 0x8000, scoped, tag = 'input window, operand 1, single buffered']
    #allocation6 [shape = 's32[1]{0}', space=sflag, size = 0x4, scoped, tag = 'scoped memory for tpu_custom_call.1']
    #allocation7 [shape = 'u8[32768]{0}', space=vmem, size = 0x8000, scoped, tag = 'input window, operand 3, single buffered']
    %14 = vsyncpa [#allocation4], 0
    %15 = vsyncpa [#allocation6], 0
    // Predicated region
    $region2: #{tpu_custom_call.1} parent=1 // pred_check
      _
    $region3: #{tpu_custom_call.1} parent=1 // pred_check_branch
      %17 = sbr.rel (0) target = $region5
    $region4: #{tpu_custom_call.1} parent=1 // pred_region
      %s19 = ssub.s32 128, 128
      %20 = vsyncadd [#allocation4], %s19
      %s21 = sshll.u32 [#allocation3], 4
      %s22 = int_to_ptr.vmem [resolvable:$true] %s21
      %27 = dma.hbm_to_vmem [thread:$0]  %s0, 128, %s22, [#allocation4], 64, 64, 4
    $region5: #{tpu_custom_call.1} parent=1 // pred_fallthru
      _
    // Predicated region
    $region6: #{tpu_custom_call.1} parent=1 // pred_check
      _
    $region7: #{tpu_custom_call.1} parent=1 // pred_check_branch
      %29 = sbr.rel (0) target = $region9
    $region8: #{tpu_custom_call.1} parent=1 // pred_region
      %s31 = ssub.s32 1024, 1024
      %32 = vsyncadd [#allocation6], %s31
      %s33 = sshll.u32 [#allocation5], 4
      %s34 = int_to_ptr.vmem [resolvable:$true] %s33
      %39 = dma.hbm_to_vmem [thread:$0]  %s1, 1024, %s34, [#allocation6], 64, 64, 4
    $region9: #{tpu_custom_call.1} parent=1 // pred_fallthru
      _
    // Predicated region
    $region10: #{tpu_custom_call.1} parent=1 // pred_check
      _
    $region11: #{tpu_custom_call.1} parent=1 // pred_check_branch
      %41 = sbr.rel (0) target = $region13
    $region12: #{tpu_custom_call.1} parent=1 // pred_region
      _
    $region13: #{tpu_custom_call.1} parent=1 // pred_fallthru
      _
    // Predicated region
    $region14: #{tpu_custom_call.1} parent=1 // pred_check
      _
    $region15: #{tpu_custom_call.1} parent=1 // pred_check_branch
      %43 = sbr.rel (0) target = $region17
    $region16: #{tpu_custom_call.1} parent=1 // pred_region
      %s45 = ssub.s32 1024, 1024
      %46 = vsyncadd [#allocation6], %s45
      %s47 = sshll.u32 [#allocation7], 4
      %s48 = int_to_ptr.vmem [resolvable:$true] %s47
      %53 = dma.hbm_to_vmem [thread:$0]  %s3, 1024, %s48, [#allocation6], 64, 64, 4
    $region17: #{tpu_custom_call.1} parent=1 // pred_fallthru
      _
    // Predicated region
    $region18: #{tpu_custom_call.1} parent=1 // pred_check
      _
    $region19: #{tpu_custom_call.1} parent=1 // pred_check_branch
      %55 = sbr.rel (0) target = $region21
    $region20: #{tpu_custom_call.1} parent=1 // pred_region
      _
    $region21: #{tpu_custom_call.1} parent=1 // pred_fallthru
      _
    // Predicated region
    $region22: #{tpu_custom_call.1} parent=1 // pred_check
      _
    $region23: #{tpu_custom_call.1} parent=1 // pred_check_branch
      %57 = sbr.rel (0) target = $region25
    $region24: #{tpu_custom_call.1} parent=1 // pred_region
      _
    $region25: #{tpu_custom_call.1} parent=1 // pred_fallthru
      _
    // Predicated region
    $region26: #{tpu_custom_call.1} parent=1 // pred_check
      _
    $region27: #{tpu_custom_call.1} parent=1 // pred_check_branch
      %59 = sbr.rel (0) target = $region29
    $region28: #{tpu_custom_call.1} parent=1 // pred_region
      _
    $region29: #{tpu_custom_call.1} parent=1 // pred_fallthru
      _
    // Predicated region
    $region30: #{tpu_custom_call.1} parent=1 // pred_check
      _
    $region31: #{tpu_custom_call.1} parent=1 // pred_check_branch
      %61 = sbr.rel (0) target = $region33
    $region32: #{tpu_custom_call.1} parent=1 // pred_region
      %62 = dma.done [#allocation4], 128
    $region33: #{tpu_custom_call.1} parent=1 // pred_fallthru
      _
    // Predicated region
    $region34: #{tpu_custom_call.1} parent=1 // pred_check
      _
    $region35: #{tpu_custom_call.1} parent=1 // pred_check_branch
      %64 = sbr.rel (0) target = $region37
    $region36: #{tpu_custom_call.1} parent=1 // pred_region
      %65 = dma.done [#allocation6], 1024
    $region37: #{tpu_custom_call.1} parent=1 // pred_fallthru
      _
    // Predicated region
    $region38: #{tpu_custom_call.1} parent=1 // pred_check
      _
    $region39: #{tpu_custom_call.1} parent=1 // pred_check_branch
      %67 = sbr.rel (0) target = $region41
    $region40: #{tpu_custom_call.1} parent=1 // pred_region
      %68 = dma.done [#allocation6], 1024
    $region41: #{tpu_custom_call.1} parent=1 // pred_fallthru
      _
    %v70 = vld [vmem:[#allocation3] sm:$0xf]
    %v71 = vld [vmem:[#allocation3 + $0x4] sm:$0xf]
    %v72 = vld [vmem:[#allocation5] sm:$0xf]
    %v73 = vld [vmem:[#allocation5 + $0x4] sm:$0xf]
    %v74 = vld [vmem:[#allocation5 + $0x8] sm:$0xf]
    %v75 = vld [vmem:[#allocation5 + $0xc] sm:$0xf]
    %v76 = vld [vmem:[#allocation5 + $0x10] sm:$0xf]
    %v77 = vld [vmem:[#allocation5 + $0x14] sm:$0xf]
    %v78 = vld [vmem:[#allocation5 + $0x18] sm:$0xf]
    %v79 = vld [vmem:[#allocation5 + $0x1c] sm:$0xf]
    %v80 = vld [vmem:[#allocation5 + $0x20] sm:$0xf]
    %v81 = vld [vmem:[#allocation5 + $0x24] sm:$0xf]
    %v82 = vld [vmem:[#allocation5 + $0x28] sm:$0xf]
    %v83 = vld [vmem:[#allocation5 + $0x2c] sm:$0xf]
    %v84 = vld [vmem:[#allocation5 + $0x30] sm:$0xf]
    %v85 = vld [vmem:[#allocation5 + $0x34] sm:$0xf]
    %v86 = vld [vmem:[#allocation5 + $0x38] sm:$0xf]
    %v87 = vld [vmem:[#allocation5 + $0x3c] sm:$0xf]
    %v88 = vld [vmem:[%s2] sm:$0x1]
    %v90 = vlaneseq
    %v91 = vshrl.u32 %v90, 7
    %v92 = vsub.s32 0, %v91
    %v93 = vrot.slane %v88, %v92
    %v97 = vunpack.c.l.b16 %v70
    %v98 = vunpack.c.l.b16 %v71
    %v99 = vpack.c.b16 %v98, %v97
    %v117 = vunpack.c.l.b16 %v72
    %v118 = vunpack.c.l.b16 %v73
    %v119 = vunpack.c.l.b16 %v74
    %v120 = vunpack.c.l.b16 %v75
    %v121 = vunpack.c.l.b16 %v76
    %v122 = vunpack.c.l.b16 %v77
    %v123 = vunpack.c.l.b16 %v78
    %v124 = vunpack.c.l.b16 %v79
    %v125 = vunpack.c.l.b16 %v80
    %v126 = vunpack.c.l.b16 %v81
    %v127 = vunpack.c.l.b16 %v82
    %v128 = vunpack.c.l.b16 %v83
    %v129 = vunpack.c.l.b16 %v84
    %v130 = vunpack.c.l.b16 %v85
    %v131 = vunpack.c.l.b16 %v86
    %v132 = vunpack.c.l.b16 %v87
    %v133 = vpack.c.b16 %v118, %v117
    %v134 = vpack.c.b16 %v120, %v119
    %v135 = vpack.c.b16 %v122, %v121
    %v136 = vpack.c.b16 %v124, %v123
    %v137 = vpack.c.b16 %v126, %v125
    %v138 = vpack.c.b16 %v128, %v127
    %v139 = vpack.c.b16 %v130, %v129
    %v140 = vpack.c.b16 %v132, %v131
    %149 = vmatprep.subr.bf16.mxu0 0
    %150 = vmatpush1.bf16.msra.mxu0 %v133
    %151 = vmatprep.subr.bf16.mxu0 0
    %152 = vmatpush1.bf16.msra.mxu0 %v134
    %153 = vmatprep.subr.bf16.mxu0 0
    %154 = vmatpush1.bf16.msra.mxu0 %v135
    %155 = vmatprep.subr.bf16.mxu0 0
    %156 = vmatpush1.bf16.msra.mxu0 %v136
    %157 = vmatprep.subr.bf16.mxu0 0
    %158 = vmatpush1.bf16.msra.mxu0 %v137
    %159 = vmatprep.subr.bf16.mxu0 0
    %160 = vmatpush1.bf16.msra.mxu0 %v138
    %161 = vmatprep.subr.bf16.mxu0 0
    %162 = vmatpush1.bf16.msra.mxu0 %v139
    %163 = vmatprep.subr.bf16.mxu0 0
    %164 = vmatpush1.bf16.msra.mxu0 %v140
    %165 = vmatprep.subr.bf16.mxu0 0
    %166 = vmatpush1.bf16.msra.mxu0 0
    %167 = vmatprep.subr.bf16.mxu0 0
    %168 = vmatpush1.bf16.msra.mxu0 0
    %169 = vmatprep.subr.bf16.mxu0 0
    %170 = vmatpush1.bf16.msra.mxu0 0
    %171 = vmatprep.subr.bf16.mxu0 0
    %172 = vmatpush1.bf16.msra.mxu0 0
    %173 = vmatprep.subr.bf16.mxu0 0
    %174 = vmatpush1.bf16.msra.mxu0 0
    %175 = vmatprep.subr.bf16.mxu0 0
    %176 = vmatpush1.bf16.msra.mxu0 0
    %177 = vmatprep.subr.bf16.mxu0 0
    %178 = vmatpush1.bf16.msra.mxu0 0
    %179 = vmatprep.subr.bf16.mxu0 0
    %180 = vmatpush1.bf16.msra.mxu0 0
    %181 = vmatprep.mubr.bf16.mxu0 0
    %182 = vmatmul.mubr.bf16.gmra.mrb[0].mxu0 %v99
    %v183 = vpop.f32.mrb[0].mxu0
    %v184 = vadd.f32 %v93, %v183
    %v185 = vpop.f32.mrb[0].mxu0
    %v186 = vpop.f32.mrb[0].mxu0
    %v187 = vadd.f32 %v93, %v186
    %v188 = vpop.f32.mrb[0].mxu0
    %189 = vdwg.mxu0
    %v190 = vmax.f32 %v184, 0.0
    %v191 = vmax.f32 %v187, 0.0
    %v192 = vpack.c.bf16 %v191, %v190
    %v193 = vld [vmem:[#allocation7] sm:$0xf]
    %v194 = vld [vmem:[#allocation7 + $0x4] sm:$0xf]
    %v195 = vld [vmem:[#allocation7 + $0x8] sm:$0xf]
    %v196 = vld [vmem:[#allocation7 + $0xc] sm:$0xf]
    %v197 = vld [vmem:[#allocation7 + $0x10] sm:$0xf]
    %v198 = vld [vmem:[#allocation7 + $0x14] sm:$0xf]
    %v199 = vld [vmem:[#allocation7 + $0x18] sm:$0xf]
    %v200 = vld [vmem:[#allocation7 + $0x1c] sm:$0xf]
    %v201 = vld [vmem:[#allocation7 + $0x20] sm:$0xf]
    %v202 = vld [vmem:[#allocation7 + $0x24] sm:$0xf]
    %v203 = vld [vmem:[#allocation7 + $0x28] sm:$0xf]
    %v204 = vld [vmem:[#allocation7 + $0x2c] sm:$0xf]
    %v205 = vld [vmem:[#allocation7 + $0x30] sm:$0xf]
    %v206 = vld [vmem:[#allocation7 + $0x34] sm:$0xf]
    %v207 = vld [vmem:[#allocation7 + $0x38] sm:$0xf]
    %v208 = vld [vmem:[#allocation7 + $0x3c] sm:$0xf]
    %v209 = vld [vmem:[%s4] sm:$0x1]
    %v211 = vlaneseq
    %v212 = vshrl.u32 %v211, 7
    %v213 = vsub.s32 0, %v212
    %v214 = vrot.slane %v209, %v213
    %v232 = vunpack.c.l.b16 %v193
    %v233 = vunpack.c.l.b16 %v194
    %v234 = vunpack.c.l.b16 %v195
    %v235 = vunpack.c.l.b16 %v196
    %v236 = vunpack.c.l.b16 %v197
    %v237 = vunpack.c.l.b16 %v198
    %v238 = vunpack.c.l.b16 %v199
    %v239 = vunpack.c.l.b16 %v200
    %v240 = vunpack.c.l.b16 %v201
    %v241 = vunpack.c.l.b16 %v202
    %v242 = vunpack.c.l.b16 %v203
    %v243 = vunpack.c.l.b16 %v204
    %v244 = vunpack.c.l.b16 %v205
    %v245 = vunpack.c.l.b16 %v206
    %v246 = vunpack.c.l.b16 %v207
    %v247 = vunpack.c.l.b16 %v208
    %v248 = vpack.c.b16 %v233, %v232
    %v249 = vpack.c.b16 %v235, %v234
    %v250 = vpack.c.b16 %v237, %v236
    %v251 = vpack.c.b16 %v239, %v238
    %v252 = vpack.c.b16 %v241, %v240
    %v253 = vpack.c.b16 %v243, %v242
    %v254 = vpack.c.b16 %v245, %v244
    %v255 = vpack.c.b16 %v247, %v246
    %264 = vmatprep.subr.bf16.mxu0 0
    %265 = vmatpush1.bf16.msra.mxu0 %v248
    %266 = vmatprep.subr.bf16.mxu0 0
    %267 = vmatpush1.bf16.msra.mxu0 %v249
    %268 = vmatprep.subr.bf16.mxu0 0
    %269 = vmatpush1.bf16.msra.mxu0 %v250
    %270 = vmatprep.subr.bf16.mxu0 0
    %271 = vmatpush1.bf16.msra.mxu0 %v251
    %272 = vmatprep.subr.bf16.mxu0 0
    %273 = vmatpush1.bf16.msra.mxu0 %v252
    %274 = vmatprep.subr.bf16.mxu0 0
    %275 = vmatpush1.bf16.msra.mxu0 %v253
    %276 = vmatprep.subr.bf16.mxu0 0
    %277 = vmatpush1.bf16.msra.mxu0 %v254
    %278 = vmatprep.subr.bf16.mxu0 0
    %279 = vmatpush1.bf16.msra.mxu0 %v255
    %280 = vmatprep.subr.bf16.mxu0 0
    %281 = vmatpush1.bf16.msra.mxu0 0
    %282 = vmatprep.subr.bf16.mxu0 0
    %283 = vmatpush1.bf16.msra.mxu0 0
    %284 = vmatprep.subr.bf16.mxu0 0
    %285 = vmatpush1.bf16.msra.mxu0 0
    %286 = vmatprep.subr.bf16.mxu0 0
    %287 = vmatpush1.bf16.msra.mxu0 0
    %288 = vmatprep.subr.bf16.mxu0 0
    %289 = vmatpush1.bf16.msra.mxu0 0
    %290 = vmatprep.subr.bf16.mxu0 0
    %291 = vmatpush1.bf16.msra.mxu0 0
    %292 = vmatprep.subr.bf16.mxu0 0
    %293 = vmatpush1.bf16.msra.mxu0 0
    %294 = vmatprep.subr.bf16.mxu0 0
    %295 = vmatpush1.bf16.msra.mxu0 0
    %296 = vmatprep.mubr.bf16.mxu0 0
    %297 = vmatmul.mubr.bf16.gmra.mrb[0].mxu0 %v192
    %v298 = vpop.f32.mrb[0].mxu0
    %v299 = vadd.f32 %v214, %v298
    %v300 = vpop.f32.mrb[0].mxu0
    %v301 = vpop.f32.mrb[0].mxu0
    %v302 = vadd.f32 %v214, %v301
    %v303 = vpop.f32.mrb[0].mxu0
    %304 = vdwg.mxu0
    %v305 = vmax.f32 %v299, 0.0
    %v306 = vmax.f32 %v302, 0.0
    %v307 = vld [vmem:[%s5] sm:$0x1]
    %v309 = vlaneseq
    %v310 = vshrl.u32 %v309, 7
    %v311 = vsub.s32 0, %v310
    %v312 = vrot.slane %v307, %v311
    %v314 = vmul.f32 %v305, %v312
    %v315 = vmul.f32 %v306, %v312
    %316 = vadd.xlane.f32.xlu0 %v314
    %v317 = vpop.xlane.xlu0 %316
    %318 = vadd.xlane.f32.xlu0 %v315
    %v319 = vpop.xlane.xlu0 %318
    %v320 = vld [vmem:[#allocation2] sm:$0x1]
    %v322 = vlaneseq
    %v323 = vshrl.u32 %v322, 7
    %v324 = vsub.s32 0, %v323
    %v325 = vrot.slane %v320, %v324
    %v327 = vadd.f32 %v317, %v325
    %v328 = vadd.f32 %v319, %v325
    %vm329 = vcmask 7168
    %330 = vst.msk [vmem:[%s7] sm:$0xff] %vm329, %v327
    %331 = vst.msk [vmem:[%s7 + $0x8] sm:$0xff] %vm329, %v328
    // Predicated region
    $region42: #{tpu_custom_call.1} parent=1 // pred_check
      _
    $region43: #{tpu_custom_call.1} parent=1 // pred_check_branch
      %333 = sbr.rel (0) target = $region45
    $region44: #{tpu_custom_call.1} parent=1 // pred_region
      _
    $region45: #{tpu_custom_call.1} parent=1 // pred_fallthru
      _
    // Predicated region
    $region46: #{tpu_custom_call.1} parent=1 // pred_check
      _
    $region47: #{tpu_custom_call.1} parent=1 // pred_check_branch
      %335 = sbr.rel (0) target = $region49
    $region48: #{tpu_custom_call.1} parent=1 // pred_region
      _
    $region49: #{tpu_custom_call.1} parent=1 // pred_fallthru
      _
    %336 = vsyncpa [#allocation4], 1
    %337 = vsyncpa [#allocation6], 1

// kernel: tpu_custom_call.1
$region0: #{tpu_custom_call.1}
  #allocation0 [shape = 'u32[]', space=smem, size = 0x4, offset = 0x4, fixed_abs, tag = 'smem constant byte address 0x4 - core index']
  #allocation1 [shape = 'u32[144,128]{1,0:T(1,128)}', space=vmem, size = 0x12000, scoped, tag = 'internal scratch']
  #allocation2 [shape = 'f32[1,1]{1,0:T(1,128)S(1)}', space=vmem, size = 0x200, scoped, tag = 'scoped memory for tpu_custom_call.1']
  %s0 = inlined_call_operand.hbm [shape: bf16[16,128], index: 0, kind: input, shape index: {}]
  %s1 = inlined_call_operand.hbm [shape: bf16[128,128], index: 1, kind: input, shape index: {}]
  %s2 = inlined_call_operand.vmem [shape: f32[1,128], index: 2, kind: input, shape index: {}]
  %s3 = inlined_call_operand.hbm [shape: bf16[128,128], index: 3, kind: input, shape index: {}]
  %s4 = inlined_call_operand.vmem [shape: f32[1,128], index: 4, kind: input, shape index: {}]
  %s5 = inlined_call_operand.vmem [shape: f32[1,128], index: 5, kind: input, shape index: {}]
  %s6 = inlined_call_operand.<no memory space> [shape: f32[1,1], index: 6, kind: input, shape index: {}]
  %s7 = inlined_call_operand.vmem [shape: f32[16,1], index: 7, kind: output, shape index: {}]
  %s8 = sld [smem:[#allocation0]]
  $region50: #{tpu_custom_call.1} parent=0
    _
  %s10 = ssub.s32 1, %s8
  %s11 = scalar_select 0, %s10, %s8
  %v12 = vstv %s6
  %13 = vst [vmem:[#allocation2] sm:$0x1] %v12
  $region1: #{tpu_custom_call.1} parent=0
    #allocation3 [shape = 'u8[4096]{0}', space=vmem, size = 0x1000, scoped, tag = 'input window, operand 0, single buffered']
    #allocation4 [shape = 's32[1]{0}', space=sflag, size = 0x4, scoped, tag = 'scoped memory for tpu_custom_call.1']
    #allocation5 [shape = 'u8[32768]{0}', space=vmem, size = 0x8000, scoped, tag = 'input window, operand 1, single buffered']
    #allocation6 [shape = 's32[1]{0}', space=sflag, size = 0x4, scoped, tag = 'scoped memory for tpu_custom_call.1']
    #allocation7 [shape = 'u8[32768]{0}', space=vmem, size = 0x8000, scoped, tag = 'input window, operand 3, single buffered']
    %14 = vsyncpa [#allocation4], 0
    %15 = vsyncpa [#allocation6], 0
    // Predicated region
    $region2: #{tpu_custom_call.1} parent=1 // pred_check
      _
    $region3: #{tpu_custom_call.1} parent=1 // pred_check_branch
      %17 = sbr.rel (0) target = $region5
    $region4: #{tpu_custom_call.1} parent=1 // pred_region
      %s19 = ssub.s32 128, 128
      %20 = vsyncadd [#allocation4], %s19
      %s21 = sshll.u32 [#allocation3], 4
      %s22 = int_to_ptr.vmem [resolvable:$true] %s21
      %27 = dma.hbm_to_vmem [thread:$0]  %s0, 128, %s22, [#allocation4], 64, 64, 4
    $region5: #{tpu_custom_call.1} parent=1 // pred_fallthru
      _
    // Predicated region
    $region6: #{tpu_custom_call.1} parent=1 // pred_check
      _
    $region7: #{tpu_custom_call.1} parent=1 // pred_check_branch
      %29 = sbr.rel (0) target = $region9
    $region8: #{tpu_custom_call.1} parent=1 // pred_region
      %s31 = ssub.s32 1024, 1024
      %32 = vsyncadd [#allocation6], %s31
      %s33 = sshll.u32 [#allocation5], 4
      %s34 = int_to_ptr.vmem [resolvable:$true] %s33
      %39 = dma.hbm_to_vmem [thread:$0]  %s1, 1024, %s34, [#allocation6], 64, 64, 4
    $region9: #{tpu_custom_call.1} parent=1 // pred_fallthru
      _
    // Predicated region
    $region10: #{tpu_custom_call.1} parent=1 // pred_check
      _
    $region11: #{tpu_custom_call.1} parent=1 // pred_check_branch
      %41 = sbr.rel (0) target = $region13
    $region12: #{tpu_custom_call.1} parent=1 // pred_region
      _
    $region13: #{tpu_custom_call.1} parent=1 // pred_fallthru
      _
    // Predicated region
    $region14: #{tpu_custom_call.1} parent=1 // pred_check
      _
    $region15: #{tpu_custom_call.1} parent=1 // pred_check_branch
      %43 = sbr.rel (0) target = $region17
    $region16: #{tpu_custom_call.1} parent=1 // pred_region
      %s45 = ssub.s32 1024, 1024
      %46 = vsyncadd [#allocation6], %s45
      %s47 = sshll.u32 [#allocation7], 4
      %s48 = int_to_ptr.vmem [resolvable:$true] %s47
      %53 = dma.hbm_to_vmem [thread:$0]  %s3, 1024, %s48, [#allocation6], 64, 64, 4
    $region17: #{tpu_custom_call.1} parent=1 // pred_fallthru
      _
    // Predicated region
    $region18: #{tpu_custom_call.1} parent=1 // pred_check
      _
    $region19: #{tpu_custom_call.1} parent=1 // pred_check_branch
      %55 = sbr.rel (0) target = $region21
    $region20: #{tpu_custom_call.1} parent=1 // pred_region
      _
    $region21: #{tpu_custom_call.1} parent=1 // pred_fallthru
      _
    // Predicated region
    $region22: #{tpu_custom_call.1} parent=1 // pred_check
      _
    $region23: #{tpu_custom_call.1} parent=1 // pred_check_branch
      %57 = sbr.rel (0) target = $region25
    $region24: #{tpu_custom_call.1} parent=1 // pred_region
      _
    $region25: #{tpu_custom_call.1} parent=1 // pred_fallthru
      _
    // Predicated region
    $region26: #{tpu_custom_call.1} parent=1 // pred_check
      _
    $region27: #{tpu_custom_call.1} parent=1 // pred_check_branch
      %59 = sbr.rel (0) target = $region29
    $region28: #{tpu_custom_call.1} parent=1 // pred_region
      _
    $region29: #{tpu_custom_call.1} parent=1 // pred_fallthru
      _
    // Predicated region
    $region30: #{tpu_custom_call.1} parent=1 // pred_check
      _
    $region31: #{tpu_custom_call.1} parent=1 // pred_check_branch
      %61 = sbr.rel (0) target = $region33
    $region32: #{tpu_custom_call.1} parent=1 // pred_region
      %62 = dma.done [#allocation4], 128
    $region33: #{tpu_custom_call.1} parent=1 // pred_fallthru
      _
    // Predicated region
    $region34: #{tpu_custom_call.1} parent=1 // pred_check
      _
    $region35: #{tpu_custom_call.1} parent=1 // pred_check_branch
      %64 = sbr.rel (0) target = $region37
    $region36: #{tpu_custom_call.1} parent=1 // pred_region
      %65 = dma.done [#allocation6], 1024
    $region37: #{tpu_custom_call.1} parent=1 // pred_fallthru
      _
    // Predicated region
    $region38: #{tpu_custom_call.1} parent=1 // pred_check
      _
    $region39: #{tpu_custom_call.1} parent=1 // pred_check_branch
      %67 = sbr.rel (0) target = $region41
    $region40: #{tpu_custom_call.1} parent=1 // pred_region
      %68 = dma.done [#allocation6], 1024
    $region41: #{tpu_custom_call.1} parent=1 // pred_fallthru
      _
    %v70 = vld [vmem:[#allocation3] sm:$0xf]
    %v71 = vld [vmem:[#allocation3 + $0x4] sm:$0xf]
    %v72 = vld [vmem:[#allocation5] sm:$0xf]
    %v73 = vld [vmem:[#allocation5 + $0x4] sm:$0xf]
    %v74 = vld [vmem:[#allocation5 + $0x8] sm:$0xf]
    %v75 = vld [vmem:[#allocation5 + $0xc] sm:$0xf]
    %v76 = vld [vmem:[#allocation5 + $0x10] sm:$0xf]
    %v77 = vld [vmem:[#allocation5 + $0x14] sm:$0xf]
    %v78 = vld [vmem:[#allocation5 + $0x18] sm:$0xf]
    %v79 = vld [vmem:[#allocation5 + $0x1c] sm:$0xf]
    %v80 = vld [vmem:[#allocation5 + $0x20] sm:$0xf]
    %v81 = vld [vmem:[#allocation5 + $0x24] sm:$0xf]
    %v82 = vld [vmem:[#allocation5 + $0x28] sm:$0xf]
    %v83 = vld [vmem:[#allocation5 + $0x2c] sm:$0xf]
    %v84 = vld [vmem:[#allocation5 + $0x30] sm:$0xf]
    %v85 = vld [vmem:[#allocation5 + $0x34] sm:$0xf]
    %v86 = vld [vmem:[#allocation5 + $0x38] sm:$0xf]
    %v87 = vld [vmem:[#allocation5 + $0x3c] sm:$0xf]
    %v88 = vld [vmem:[%s2] sm:$0x1]
    %v90 = vlaneseq
    %v91 = vshrl.u32 %v90, 7
    %v92 = vsub.s32 0, %v91
    %v93 = vrot.slane %v88, %v92
    %v97 = vunpack.c.l.b16 %v70
    %v98 = vunpack.c.l.b16 %v71
    %v99 = vpack.c.b16 %v98, %v97
    %v117 = vunpack.c.l.b16 %v72
    %v118 = vunpack.c.l.b16 %v73
    %v119 = vunpack.c.l.b16 %v74
    %v120 = vunpack.c.l.b16 %v75
    %v121 = vunpack.c.l.b16 %v76
    %v122 = vunpack.c.l.b16 %v77
    %v123 = vunpack.c.l.b16 %v78
    %v124 = vunpack.c.l.b16 %v79
    %v125 = vunpack.c.l.b16 %v80
    %v126 = vunpack.c.l.b16 %v81
    %v127 = vunpack.c.l.b16 %v82
    %v128 = vunpack.c.l.b16 %v83
    %v129 = vunpack.c.l.b16 %v84
    %v130 = vunpack.c.l.b16 %v85
    %v131 = vunpack.c.l.b16 %v86
    %v132 = vunpack.c.l.b16 %v87
    %v133 = vpack.c.b16 %v118, %v117
    %v134 = vpack.c.b16 %v120, %v119
    %v135 = vpack.c.b16 %v122, %v121
    %v136 = vpack.c.b16 %v124, %v123
    %v137 = vpack.c.b16 %v126, %v125
    %v138 = vpack.c.b16 %v128, %v127
    %v139 = vpack.c.b16 %v130, %v129
    %v140 = vpack.c.b16 %v132, %v131
    %149 = vmatprep.subr.bf16.mxu0 0
    %150 = vmatpush1.bf16.msra.mxu0 %v133
    %151 = vmatprep.subr.bf16.mxu0 0
    %152 = vmatpush1.bf16.msra.mxu0 %v134
    %153 = vmatprep.subr.bf16.mxu0 0
    %154 = vmatpush1.bf16.msra.mxu0 %v135
    %155 = vmatprep.subr.bf16.mxu0 0
    %156 = vmatpush1.bf16.msra.mxu0 %v136
    %157 = vmatprep.subr.bf16.mxu0 0
    %158 = vmatpush1.bf16.msra.mxu0 %v137
    %159 = vmatprep.subr.bf16.mxu0 0
    %160 = vmatpush1.bf16.msra.mxu0 %v138
    %161 = vmatprep.subr.bf16.mxu0 0
    %162 = vmatpush1.bf16.msra.mxu0 %v139
    %163 = vmatprep.subr.bf16.mxu0 0
    %164 = vmatpush1.bf16.msra.mxu0 %v140
    %165 = vmatprep.subr.bf16.mxu0 0
    %166 = vmatpush1.bf16.msra.mxu0 0
    %167 = vmatprep.subr.bf16.mxu0 0
    %168 = vmatpush1.bf16.msra.mxu0 0
    %169 = vmatprep.subr.bf16.mxu0 0
    %170 = vmatpush1.bf16.msra.mxu0 0
    %171 = vmatprep.subr.bf16.mxu0 0
    %172 = vmatpush1.bf16.msra.mxu0 0
    %173 = vmatprep.subr.bf16.mxu0 0
    %174 = vmatpush1.bf16.msra.mxu0 0
    %175 = vmatprep.subr.bf16.mxu0 0
    %176 = vmatpush1.bf16.msra.mxu0 0
    %177 = vmatprep.subr.bf16.mxu0 0
    %178 = vmatpush1.bf16.msra.mxu0 0
    %179 = vmatprep.subr.bf16.mxu0 0
    %180 = vmatpush1.bf16.msra.mxu0 0
    %181 = vmatprep.mubr.bf16.mxu0 0
    %182 = vmatmul.mubr.bf16.gmra.mrb[0].mxu0 %v99
    %v183 = vpop.f32.mrb[0].mxu0
    %v184 = vadd.f32 %v93, %v183
    %v185 = vpop.f32.mrb[0].mxu0
    %v186 = vpop.f32.mrb[0].mxu0
    %v187 = vadd.f32 %v93, %v186
    %v188 = vpop.f32.mrb[0].mxu0
    %189 = vdwg.mxu0
    %v190 = vmax.f32 %v184, 0.0
    %v191 = vmax.f32 %v187, 0.0
    %v192 = vpack.c.bf16 %v191, %v190
    %v193 = vld [vmem:[#allocation7] sm:$0xf]
    %v194 = vld [vmem:[#allocation7 + $0x4] sm:$0xf]
    %v195 = vld [vmem:[#allocation7 + $0x8] sm:$0xf]
    %v196 = vld [vmem:[#allocation7 + $0xc] sm:$0xf]
    %v197 = vld [vmem:[#allocation7 + $0x10] sm:$0xf]
    %v198 = vld [vmem:[#allocation7 + $0x14] sm:$0xf]
    %v199 = vld [vmem:[#allocation7 + $0x18] sm:$0xf]
    %v200 = vld [vmem:[#allocation7 + $0x1c] sm:$0xf]
    %v201 = vld [vmem:[#allocation7 + $0x20] sm:$0xf]
    %v202 = vld [vmem:[#allocation7 + $0x24] sm:$0xf]
    %v203 = vld [vmem:[#allocation7 + $0x28] sm:$0xf]
    %v204 = vld [vmem:[#allocation7 + $0x2c] sm:$0xf]
    %v205 = vld [vmem:[#allocation7 + $0x30] sm:$0xf]
    %v206 = vld [vmem:[#allocation7 + $0x34] sm:$0xf]
    %v207 = vld [vmem:[#allocation7 + $0x38] sm:$0xf]
    %v208 = vld [vmem:[#allocation7 + $0x3c] sm:$0xf]
    %v209 = vld [vmem:[%s4] sm:$0x1]
    %v211 = vlaneseq
    %v212 = vshrl.u32 %v211, 7
    %v213 = vsub.s32 0, %v212
    %v214 = vrot.slane %v209, %v213
    %v232 = vunpack.c.l.b16 %v193
    %v233 = vunpack.c.l.b16 %v194
    %v234 = vunpack.c.l.b16 %v195
    %v235 = vunpack.c.l.b16 %v196
    %v236 = vunpack.c.l.b16 %v197
    %v237 = vunpack.c.l.b16 %v198
    %v238 = vunpack.c.l.b16 %v199
    %v239 = vunpack.c.l.b16 %v200
    %v240 = vunpack.c.l.b16 %v201
    %v241 = vunpack.c.l.b16 %v202
    %v242 = vunpack.c.l.b16 %v203
    %v243 = vunpack.c.l.b16 %v204
    %v244 = vunpack.c.l.b16 %v205
    %v245 = vunpack.c.l.b16 %v206
    %v246 = vunpack.c.l.b16 %v207
    %v247 = vunpack.c.l.b16 %v208
    %v248 = vpack.c.b16 %v233, %v232
    %v249 = vpack.c.b16 %v235, %v234
    %v250 = vpack.c.b16 %v237, %v236
    %v251 = vpack.c.b16 %v239, %v238
    %v252 = vpack.c.b16 %v241, %v240
    %v253 = vpack.c.b16 %v243, %v242
    %v254 = vpack.c.b16 %v245, %v244
    %v255 = vpack.c.b16 %v247, %v246
    %264 = vmatprep.subr.bf16.mxu0 0
    %265 = vmatpush1.bf16.msra.mxu0 %v248
    %266 = vmatprep.subr.bf16.mxu0 0
    %267 = vmatpush1.bf16.msra.mxu0 %v249
    %268 = vmatprep.subr.bf16.mxu0 0
    %269 = vmatpush1.bf16.msra.mxu0 %v250
    %270 = vmatprep.subr.bf16.mxu0 0
    %271 = vmatpush1.bf16.msra.mxu0 %v251
    %272 = vmatprep.subr.bf16.mxu0 0
    %273 = vmatpush1.bf16.msra.mxu0 %v252
    %274 = vmatprep.subr.bf16.mxu0 0
    %275 = vmatpush1.bf16.msra.mxu0 %v253
    %276 = vmatprep.subr.bf16.mxu0 0
    %277 = vmatpush1.bf16.msra.mxu0 %v254
    %278 = vmatprep.subr.bf16.mxu0 0
    %279 = vmatpush1.bf16.msra.mxu0 %v255
    %280 = vmatprep.subr.bf16.mxu0 0
    %281 = vmatpush1.bf16.msra.mxu0 0
    %282 = vmatprep.subr.bf16.mxu0 0
    %283 = vmatpush1.bf16.msra.mxu0 0
    %284 = vmatprep.subr.bf16.mxu0 0
    %285 = vmatpush1.bf16.msra.mxu0 0
    %286 = vmatprep.subr.bf16.mxu0 0
    %287 = vmatpush1.bf16.msra.mxu0 0
    %288 = vmatprep.subr.bf16.mxu0 0
    %289 = vmatpush1.bf16.msra.mxu0 0
    %290 = vmatprep.subr.bf16.mxu0 0
    %291 = vmatpush1.bf16.msra.mxu0 0
    %292 = vmatprep.subr.bf16.mxu0 0
    %293 = vmatpush1.bf16.msra.mxu0 0
    %294 = vmatprep.subr.bf16.mxu0 0
    %295 = vmatpush1.bf16.msra.mxu0 0
    %296 = vmatprep.mubr.bf16.mxu0 0
    %297 = vmatmul.mubr.bf16.gmra.mrb[0].mxu0 %v192
    %v298 = vpop.f32.mrb[0].mxu0
    %v299 = vadd.f32 %v214, %v298
    %v300 = vpop.f32.mrb[0].mxu0
    %v301 = vpop.f32.mrb[0].mxu0
    %v302 = vadd.f32 %v214, %v301
    %v303 = vpop.f32.mrb[0].mxu0
    %304 = vdwg.mxu0
    %v305 = vmax.f32 %v299, 0.0
    %v306 = vmax.f32 %v302, 0.0
    %v307 = vld [vmem:[%s5] sm:$0x1]
    %v309 = vlaneseq
    %v310 = vshrl.u32 %v309, 7
    %v311 = vsub.s32 0, %v310
    %v312 = vrot.slane %v307, %v311
    %v314 = vmul.f32 %v305, %v312
    %v315 = vmul.f32 %v306, %v312
    %316 = vadd.xlane.f32.xlu0 %v314
    %v317 = vpop.xlane.xlu0 %316
    %318 = vadd.xlane.f32.xlu0 %v315
    %v319 = vpop.xlane.xlu0 %318
    %v320 = vld [vmem:[#allocation2] sm:$0x1]
    %v322 = vlaneseq
    %v323 = vshrl.u32 %v322, 7
    %v324 = vsub.s32 0, %v323
    %v325 = vrot.slane %v320, %v324
    %v327 = vadd.f32 %v317, %v325
    %v328 = vadd.f32 %v319, %v325
    %vm329 = vcmask 7168
    %330 = vst.msk [vmem:[%s7] sm:$0xff] %vm329, %v327
    %331 = vst.msk [vmem:[%s7 + $0x8] sm:$0xff] %vm329, %v328
    // Predicated region
    $region42: #{tpu_custom_call.1} parent=1 // pred_check
      _
    $region43: #{tpu_custom_call.1} parent=1 // pred_check_branch
      %333 = sbr.rel (0) target = $region45
    $region44: #{tpu_custom_call.1} parent=1 // pred_region
      _
    $region45: #{tpu_custom_call.1} parent=1 // pred_fallthru
      _
    // Predicated region
    $region46: #{tpu_custom_call.1} parent=1 // pred_check
      _
    $region47: #{tpu_custom_call.1} parent=1 // pred_check_branch
      %335 = sbr.rel (0) target = $region49
    $region48: #{tpu_custom_call.1} parent=1 // pred_region
      _
    $region49: #{tpu_custom_call.1} parent=1 // pred_fallthru
      _
    %336 = vsyncpa [#allocation4], 1
    %337 = vsyncpa [#allocation6], 1

</llo_original>
